<compile_context>
chip_gen: v7x
topology: tpu7x:2x2x1
jax: 0.10.0
libtpu: 0.0.40
codegen_flags: <defaults>
</compile_context>

<pallas_src>
import functools

import jax
import jax.numpy as jnp
from jax.experimental import pallas as pl
from jax.experimental.pallas import tpu as pltpu


def _pooled_lookup_kernel(idx_ref, len_ref, tbl_ref, out_ref, *,
                          batch, bag, b_tile, vocab):
    """One (table, batch_tile) grid step.

    idx_ref: SMEM (T*B*BAG,) int32  flattened padded jagged ids
    len_ref: SMEM (T*B,)     int32  flattened bag lengths
    tbl_ref: VMEM (V, D)            this table's weights (staged once per table
                                    by the pipeline: table grid axis is OUTER)
    out_ref: VMEM (b_tile, D)       pooled output block (one dense store)
    """
    t = pl.program_id(0)
    bt = pl.program_id(1)
    d = tbl_ref.shape[1]

    row_base = t * batch + bt * b_tile        # first (table, sample) of the tile

    pooled_rows = []
    for b in range(b_tile):                   # static unroll; b_tile is small
        n_valid = len_ref[row_base + b]       # SMEM scalar read
        idx_base = (row_base + b) * bag
        acc = jnp.zeros((1, d), jnp.float32)
        for j in range(bag):
            # Clamp so a bad / padded id can never read out of bounds
            # (matches jnp.take clamping in the reference implementation).
            rid = jnp.clip(idx_ref[idx_base + j], 0, vocab - 1)
            row = tbl_ref[pl.ds(rid, 1), :].astype(jnp.float32)   # (1, D) vld
            # Padded bag slots are masked out (row * 0) -> exact SUM pooling.
            acc = acc + row * (j < n_valid).astype(jnp.float32)
        pooled_rows.append(acc)

    # Single lane/sublane-dense (b_tile, D) block store.
    out_ref[...] = jnp.concatenate(pooled_rows, axis=0).astype(out_ref.dtype)


def sharded_embedding_table_forward(indices, lengths, tables, *, b_tile=None):
    """Pooled embedding lookup for all tables.

    indices: (T, B, BAG) int32   padded jagged ids per table
    lengths: (T, B)      int32   valid bag length per (table, sample)
    tables:  (T, V, D)   float   embedding weights, D % 128 == 0

    returns: (B, T, D) float32 == torch.cat([...], dim=1).reshape(B, T, D)
    """
    T, B, BAG = indices.shape
    Tt, V, D = tables.shape
    if Tt != T:
        raise ValueError("tables / indices table-count mismatch")
    if D % 128 != 0:
        raise ValueError("dim must be padded to a multiple of 128 (lane-dense)")

    if b_tile is None:
        b_tile = B if B <= 64 else 64
    if B % b_tile != 0:
        raise ValueError("batch must be a multiple of b_tile")
    if b_tile % 8 != 0 and b_tile != B:
        raise ValueError("b_tile should be a multiple of 8 (sublane-dense output)")

    # The table block is double-buffered by the pipeline; keep it well under the
    # smallest scoped-VMEM default (v7x: 32 MiB) so the same kernel shape works
    # on every generation.
    tbl_block_bytes = 2 * V * D * tables.dtype.itemsize
    if tbl_block_bytes > 24 * 1024 * 1024:
        raise ValueError("table too large for VMEM-resident path; add V-tiling")

    # Flatten scalar-prefetch arrays to 1-D: SMEM pads the trailing dim of
    # multi-dim arrays to 128, which would blow up (T, B, BAG) ~32x.
    idx_flat = indices.reshape(-1).astype(jnp.int32)
    len_flat = lengths.reshape(-1).astype(jnp.int32)

    kernel = functools.partial(_pooled_lookup_kernel,
                               batch=B, bag=BAG, b_tile=b_tile, vocab=V)

    out_flat = pl.pallas_call(
        kernel,
        out_shape=jax.ShapeDtypeStruct((B, T * D), jnp.float32),
        grid_spec=pltpu.PrefetchScalarGridSpec(
            num_scalar_prefetch=2,                   # ids, lengths -> SMEM
            grid=(T, B // b_tile),                   # table axis OUTER
            in_specs=[
                # Whole table staged into VMEM; block index constant along the
                # inner batch axis -> fetched once per table.
                pl.BlockSpec((None, V, D), lambda t, bt, idx, lens: (t, 0, 0)),
            ],
            out_specs=pl.BlockSpec((b_tile, D),
                                   lambda t, bt, idx, lens: (bt, t)),
        ),
        compiler_params=pltpu.CompilerParams(
            dimension_semantics=("parallel", "parallel")),
    )(idx_flat, len_flat, tables)

    # (B, T*D) row-major is exactly torch.cat(dim=1); this reshape is free.
    return out_flat.reshape(B, T, D)


def _reference(indices, lengths, tables):
    """Pure-JAX reference: masked gather + sum pooling per table."""
    _, _, BAG = indices.shape

    def one_table(tbl, idx, lens):
        rows = jnp.take(tbl, idx, axis=0)                          # (B, BAG, D)
        mask = (jnp.arange(BAG)[None, :] < lens[:, None])          # (B, BAG)
        return jnp.sum(rows * mask[..., None].astype(tbl.dtype), axis=1)

    pooled = jax.vmap(one_table)(tables, indices, lengths)         # (T, B, D)
    return jnp.transpose(pooled, (1, 0, 2)).astype(jnp.float32)    # (B, T, D)


if __name__ == "__main__":
    # Small synthetic config consistent with the module's __init__ args.
    batch_size = 8          # batch_size
    num_tables = 3          # len(table_names)
    dim = 128               # dim (lane-dense: multiple of 128)
    vocab = 256             # rows per embedding table
    max_bag = 4             # padded jagged bag length

    key = jax.random.PRNGKey(0)
    k_tbl, k_idx, k_len = jax.random.split(key, 3)

    tables = (jax.random.normal(k_tbl, (num_tables, vocab, dim), jnp.float32)
              * 0.05)
    indices = jax.random.randint(
        k_idx, (num_tables, batch_size, max_bag), 0, vocab, dtype=jnp.int32)
    lengths = jax.random.randint(
        k_len, (num_tables, batch_size), 1, max_bag + 1, dtype=jnp.int32)

    result = sharded_embedding_table_forward(indices, lengths, tables)
    result = jax.block_until_ready(result)

    expected = _reference(indices, lengths, tables)
    assert result.shape == (batch_size, num_tables, dim)
    assert jnp.allclose(result, expected, atol=1e-5, rtol=1e-5), float(
        jnp.max(jnp.abs(result - expected)))

    print("KERNEL_OK")
</pallas_src>

<mosaic_0001>
module attributes {stable_mosaic.version = 11 : i64} {
  func.func @_pooled_lookup_kernel(%arg0: i32, %arg1: i32, %arg2: memref<96xi32, #tpu.memory_space<smem>>, %arg3: memref<24xi32, #tpu.memory_space<smem>>, %arg4: memref<1x256x128xf32, #tpu.memory_space<vmem>>, %arg5: memref<8x128xf32, #tpu.memory_space<vmem>>) attributes {dimension_semantics = [#tpu.dimension_semantics<parallel>, #tpu.dimension_semantics<parallel>], iteration_bounds = array<i64: 3, 1>, scalar_prefetch = 2 : i64, scratch_operands = 0 : i64, tpu.core_type = #tpu.core_type<tc>, window_params = [{transform_indices = @transform_0, window_bounds = array<i64: 1, 256, 128>}, {transform_indices = @transform_1, window_bounds = array<i64: 8, 128>}]} {
    %c8_i32 = arith.constant 8 : i32
    %0 = arith.muli %arg0, %c8_i32 : i32
    %c8_i32_0 = arith.constant 8 : i32
    %1 = arith.muli %arg1, %c8_i32_0 : i32
    %2 = arith.addi %0, %1 : i32
    %c0_i32 = arith.constant 0 : i32
    %3 = arith.addi %2, %c0_i32 : i32
    %4 = arith.index_cast %3 : i32 to index
    %5 = memref.load %arg3[%4] : memref<24xi32, #tpu.memory_space<smem>>
    %c0_i32_1 = arith.constant 0 : i32
    %6 = arith.addi %2, %c0_i32_1 : i32
    %c4_i32 = arith.constant 4 : i32
    %7 = arith.muli %6, %c4_i32 : i32
    %cst = arith.constant 0.000000e+00 : f32
    %8 = vector.broadcast %cst : f32 to vector<1x128xf32>
    %c0_i32_2 = arith.constant 0 : i32
    %9 = arith.addi %7, %c0_i32_2 : i32
    %10 = arith.index_cast %9 : i32 to index
    %11 = memref.load %arg2[%10] : memref<96xi32, #tpu.memory_space<smem>>
    %c0_i32_3 = arith.constant 0 : i32
    %c255_i32 = arith.constant 255 : i32
    %12 = arith.maxsi %c0_i32_3, %11 : i32
    %13 = arith.minsi %c255_i32, %12 : i32
    %c0 = arith.constant 0 : index
    %14 = arith.index_cast %13 : i32 to index
    %c0_4 = arith.constant 0 : index
    %15 = vector.load %arg4[%c0, %14, %c0_4] : memref<1x256x128xf32, #tpu.memory_space<vmem>>, vector<1x1x128xf32>
    %16 = vector.shape_cast %15 : vector<1x1x128xf32> to vector<1x128xf32>
    %c0_i32_5 = arith.constant 0 : i32
    %17 = arith.cmpi sgt, %5, %c0_i32_5 : i32
    %18 = arith.extui %17 : i1 to i32
    %19 = arith.sitofp %18 : i32 to f32
    %20 = vector.broadcast %19 : f32 to vector<1x128xf32>
    %21 = arith.mulf %16, %20 : vector<1x128xf32>
    %22 = arith.addf %8, %21 : vector<1x128xf32>
    %c1_i32 = arith.constant 1 : i32
    %23 = arith.addi %7, %c1_i32 : i32
    %24 = arith.index_cast %23 : i32 to index
    %25 = memref.load %arg2[%24] : memref<96xi32, #tpu.memory_space<smem>>
    %c0_i32_6 = arith.constant 0 : i32
    %c255_i32_7 = arith.constant 255 : i32
    %26 = arith.maxsi %c0_i32_6, %25 : i32
    %27 = arith.minsi %c255_i32_7, %26 : i32
    %c0_8 = arith.constant 0 : index
    %28 = arith.index_cast %27 : i32 to index
    %c0_9 = arith.constant 0 : index
    %29 = vector.load %arg4[%c0_8, %28, %c0_9] : memref<1x256x128xf32, #tpu.memory_space<vmem>>, vector<1x1x128xf32>
    %30 = vector.shape_cast %29 : vector<1x1x128xf32> to vector<1x128xf32>
    %c1_i32_10 = arith.constant 1 : i32
    %31 = arith.cmpi sgt, %5, %c1_i32_10 : i32
    %32 = arith.extui %31 : i1 to i32
    %33 = arith.sitofp %32 : i32 to f32
    %34 = vector.broadcast %33 : f32 to vector<1x128xf32>
    %35 = arith.mulf %30, %34 : vector<1x128xf32>
    %36 = arith.addf %22, %35 : vector<1x128xf32>
    %c2_i32 = arith.constant 2 : i32
    %37 = arith.addi %7, %c2_i32 : i32
    %38 = arith.index_cast %37 : i32 to index
    %39 = memref.load %arg2[%38] : memref<96xi32, #tpu.memory_space<smem>>
    %c0_i32_11 = arith.constant 0 : i32
    %c255_i32_12 = arith.constant 255 : i32
    %40 = arith.maxsi %c0_i32_11, %39 : i32
    %41 = arith.minsi %c255_i32_12, %40 : i32
    %c0_13 = arith.constant 0 : index
    %42 = arith.index_cast %41 : i32 to index
    %c0_14 = arith.constant 0 : index
    %43 = vector.load %arg4[%c0_13, %42, %c0_14] : memref<1x256x128xf32, #tpu.memory_space<vmem>>, vector<1x1x128xf32>
    %44 = vector.shape_cast %43 : vector<1x1x128xf32> to vector<1x128xf32>
    %c2_i32_15 = arith.constant 2 : i32
    %45 = arith.cmpi sgt, %5, %c2_i32_15 : i32
    %46 = arith.extui %45 : i1 to i32
    %47 = arith.sitofp %46 : i32 to f32
    %48 = vector.broadcast %47 : f32 to vector<1x128xf32>
    %49 = arith.mulf %44, %48 : vector<1x128xf32>
    %50 = arith.addf %36, %49 : vector<1x128xf32>
    %c3_i32 = arith.constant 3 : i32
    %51 = arith.addi %7, %c3_i32 : i32
    %52 = arith.index_cast %51 : i32 to index
    %53 = memref.load %arg2[%52] : memref<96xi32, #tpu.memory_space<smem>>
    %c0_i32_16 = arith.constant 0 : i32
    %c255_i32_17 = arith.constant 255 : i32
    %54 = arith.maxsi %c0_i32_16, %53 : i32
    %55 = arith.minsi %c255_i32_17, %54 : i32
    %c0_18 = arith.constant 0 : index
    %56 = arith.index_cast %55 : i32 to index
    %c0_19 = arith.constant 0 : index
    %57 = vector.load %arg4[%c0_18, %56, %c0_19] : memref<1x256x128xf32, #tpu.memory_space<vmem>>, vector<1x1x128xf32>
    %58 = vector.shape_cast %57 : vector<1x1x128xf32> to vector<1x128xf32>
    %c3_i32_20 = arith.constant 3 : i32
    %59 = arith.cmpi sgt, %5, %c3_i32_20 : i32
    %60 = arith.extui %59 : i1 to i32
    %61 = arith.sitofp %60 : i32 to f32
    %62 = vector.broadcast %61 : f32 to vector<1x128xf32>
    %63 = arith.mulf %58, %62 : vector<1x128xf32>
    %64 = arith.addf %50, %63 : vector<1x128xf32>
    %c1_i32_21 = arith.constant 1 : i32
    %65 = arith.addi %2, %c1_i32_21 : i32
    %66 = arith.index_cast %65 : i32 to index
    %67 = memref.load %arg3[%66] : memref<24xi32, #tpu.memory_space<smem>>
    %c1_i32_22 = arith.constant 1 : i32
    %68 = arith.addi %2, %c1_i32_22 : i32
    %c4_i32_23 = arith.constant 4 : i32
    %69 = arith.muli %68, %c4_i32_23 : i32
    %cst_24 = arith.constant 0.000000e+00 : f32
    %70 = vector.broadcast %cst_24 : f32 to vector<1x128xf32>
    %c0_i32_25 = arith.constant 0 : i32
    %71 = arith.addi %69, %c0_i32_25 : i32
    %72 = arith.index_cast %71 : i32 to index
    %73 = memref.load %arg2[%72] : memref<96xi32, #tpu.memory_space<smem>>
    %c0_i32_26 = arith.constant 0 : i32
    %c255_i32_27 = arith.constant 255 : i32
    %74 = arith.maxsi %c0_i32_26, %73 : i32
    %75 = arith.minsi %c255_i32_27, %74 : i32
    %c0_28 = arith.constant 0 : index
    %76 = arith.index_cast %75 : i32 to index
    %c0_29 = arith.constant 0 : index
    %77 = vector.load %arg4[%c0_28, %76, %c0_29] : memref<1x256x128xf32, #tpu.memory_space<vmem>>, vector<1x1x128xf32>
    %78 = vector.shape_cast %77 : vector<1x1x128xf32> to vector<1x128xf32>
    %c0_i32_30 = arith.constant 0 : i32
    %79 = arith.cmpi sgt, %67, %c0_i32_30 : i32
    %80 = arith.extui %79 : i1 to i32
    %81 = arith.sitofp %80 : i32 to f32
    %82 = vector.broadcast %81 : f32 to vector<1x128xf32>
    %83 = arith.mulf %78, %82 : vector<1x128xf32>
    %84 = arith.addf %70, %83 : vector<1x128xf32>
    %c1_i32_31 = arith.constant 1 : i32
    %85 = arith.addi %69, %c1_i32_31 : i32
    %86 = arith.index_cast %85 : i32 to index
    %87 = memref.load %arg2[%86] : memref<96xi32, #tpu.memory_space<smem>>
    %c0_i32_32 = arith.constant 0 : i32
    %c255_i32_33 = arith.constant 255 : i32
    %88 = arith.maxsi %c0_i32_32, %87 : i32
    %89 = arith.minsi %c255_i32_33, %88 : i32
    %c0_34 = arith.constant 0 : index
    %90 = arith.index_cast %89 : i32 to index
    %c0_35 = arith.constant 0 : index
    %91 = vector.load %arg4[%c0_34, %90, %c0_35] : memref<1x256x128xf32, #tpu.memory_space<vmem>>, vector<1x1x128xf32>
    %92 = vector.shape_cast %91 : vector<1x1x128xf32> to vector<1x128xf32>
    %c1_i32_36 = arith.constant 1 : i32
    %93 = arith.cmpi sgt, %67, %c1_i32_36 : i32
    %94 = arith.extui %93 : i1 to i32
    %95 = arith.sitofp %94 : i32 to f32
    %96 = vector.broadcast %95 : f32 to vector<1x128xf32>
    %97 = arith.mulf %92, %96 : vector<1x128xf32>
    %98 = arith.addf %84, %97 : vector<1x128xf32>
    %c2_i32_37 = arith.constant 2 : i32
    %99 = arith.addi %69, %c2_i32_37 : i32
    %100 = arith.index_cast %99 : i32 to index
    %101 = memref.load %arg2[%100] : memref<96xi32, #tpu.memory_space<smem>>
    %c0_i32_38 = arith.constant 0 : i32
    %c255_i32_39 = arith.constant 255 : i32
    %102 = arith.maxsi %c0_i32_38, %101 : i32
    %103 = arith.minsi %c255_i32_39, %102 : i32
    %c0_40 = arith.constant 0 : index
    %104 = arith.index_cast %103 : i32 to index
    %c0_41 = arith.constant 0 : index
    %105 = vector.load %arg4[%c0_40, %104, %c0_41] : memref<1x256x128xf32, #tpu.memory_space<vmem>>, vector<1x1x128xf32>
    %106 = vector.shape_cast %105 : vector<1x1x128xf32> to vector<1x128xf32>
    %c2_i32_42 = arith.constant 2 : i32
    %107 = arith.cmpi sgt, %67, %c2_i32_42 : i32
    %108 = arith.extui %107 : i1 to i32
    %109 = arith.sitofp %108 : i32 to f32
    %110 = vector.broadcast %109 : f32 to vector<1x128xf32>
    %111 = arith.mulf %106, %110 : vector<1x128xf32>
    %112 = arith.addf %98, %111 : vector<1x128xf32>
    %c3_i32_43 = arith.constant 3 : i32
    %113 = arith.addi %69, %c3_i32_43 : i32
    %114 = arith.index_cast %113 : i32 to index
    %115 = memref.load %arg2[%114] : memref<96xi32, #tpu.memory_space<smem>>
    %c0_i32_44 = arith.constant 0 : i32
    %c255_i32_45 = arith.constant 255 : i32
    %116 = arith.maxsi %c0_i32_44, %115 : i32
    %117 = arith.minsi %c255_i32_45, %116 : i32
    %c0_46 = arith.constant 0 : index
    %118 = arith.index_cast %117 : i32 to index
    %c0_47 = arith.constant 0 : index
    %119 = vector.load %arg4[%c0_46, %118, %c0_47] : memref<1x256x128xf32, #tpu.memory_space<vmem>>, vector<1x1x128xf32>
    %120 = vector.shape_cast %119 : vector<1x1x128xf32> to vector<1x128xf32>
    %c3_i32_48 = arith.constant 3 : i32
    %121 = arith.cmpi sgt, %67, %c3_i32_48 : i32
    %122 = arith.extui %121 : i1 to i32
    %123 = arith.sitofp %122 : i32 to f32
    %124 = vector.broadcast %123 : f32 to vector<1x128xf32>
    %125 = arith.mulf %120, %124 : vector<1x128xf32>
    %126 = arith.addf %112, %125 : vector<1x128xf32>
    %c2_i32_49 = arith.constant 2 : i32
    %127 = arith.addi %2, %c2_i32_49 : i32
    %128 = arith.index_cast %127 : i32 to index
    %129 = memref.load %arg3[%128] : memref<24xi32, #tpu.memory_space<smem>>
    %c2_i32_50 = arith.constant 2 : i32
    %130 = arith.addi %2, %c2_i32_50 : i32
    %c4_i32_51 = arith.constant 4 : i32
    %131 = arith.muli %130, %c4_i32_51 : i32
    %cst_52 = arith.constant 0.000000e+00 : f32
    %132 = vector.broadcast %cst_52 : f32 to vector<1x128xf32>
    %c0_i32_53 = arith.constant 0 : i32
    %133 = arith.addi %131, %c0_i32_53 : i32
    %134 = arith.index_cast %133 : i32 to index
    %135 = memref.load %arg2[%134] : memref<96xi32, #tpu.memory_space<smem>>
    %c0_i32_54 = arith.constant 0 : i32
    %c255_i32_55 = arith.constant 255 : i32
    %136 = arith.maxsi %c0_i32_54, %135 : i32
    %137 = arith.minsi %c255_i32_55, %136 : i32
    %c0_56 = arith.constant 0 : index
    %138 = arith.index_cast %137 : i32 to index
    %c0_57 = arith.constant 0 : index
    %139 = vector.load %arg4[%c0_56, %138, %c0_57] : memref<1x256x128xf32, #tpu.memory_space<vmem>>, vector<1x1x128xf32>
    %140 = vector.shape_cast %139 : vector<1x1x128xf32> to vector<1x128xf32>
    %c0_i32_58 = arith.constant 0 : i32
    %141 = arith.cmpi sgt, %129, %c0_i32_58 : i32
    %142 = arith.extui %141 : i1 to i32
    %143 = arith.sitofp %142 : i32 to f32
    %144 = vector.broadcast %143 : f32 to vector<1x128xf32>
    %145 = arith.mulf %140, %144 : vector<1x128xf32>
    %146 = arith.addf %132, %145 : vector<1x128xf32>
    %c1_i32_59 = arith.constant 1 : i32
    %147 = arith.addi %131, %c1_i32_59 : i32
    %148 = arith.index_cast %147 : i32 to index
    %149 = memref.load %arg2[%148] : memref<96xi32, #tpu.memory_space<smem>>
    %c0_i32_60 = arith.constant 0 : i32
    %c255_i32_61 = arith.constant 255 : i32
    %150 = arith.maxsi %c0_i32_60, %149 : i32
    %151 = arith.minsi %c255_i32_61, %150 : i32
    %c0_62 = arith.constant 0 : index
    %152 = arith.index_cast %151 : i32 to index
    %c0_63 = arith.constant 0 : index
    %153 = vector.load %arg4[%c0_62, %152, %c0_63] : memref<1x256x128xf32, #tpu.memory_space<vmem>>, vector<1x1x128xf32>
    %154 = vector.shape_cast %153 : vector<1x1x128xf32> to vector<1x128xf32>
    %c1_i32_64 = arith.constant 1 : i32
    %155 = arith.cmpi sgt, %129, %c1_i32_64 : i32
    %156 = arith.extui %155 : i1 to i32
    %157 = arith.sitofp %156 : i32 to f32
    %158 = vector.broadcast %157 : f32 to vector<1x128xf32>
    %159 = arith.mulf %154, %158 : vector<1x128xf32>
    %160 = arith.addf %146, %159 : vector<1x128xf32>
    %c2_i32_65 = arith.constant 2 : i32
    %161 = arith.addi %131, %c2_i32_65 : i32
    %162 = arith.index_cast %161 : i32 to index
    %163 = memref.load %arg2[%162] : memref<96xi32, #tpu.memory_space<smem>>
    %c0_i32_66 = arith.constant 0 : i32
    %c255_i32_67 = arith.constant 255 : i32
    %164 = arith.maxsi %c0_i32_66, %163 : i32
    %165 = arith.minsi %c255_i32_67, %164 : i32
    %c0_68 = arith.constant 0 : index
    %166 = arith.index_cast %165 : i32 to index
    %c0_69 = arith.constant 0 : index
    %167 = vector.load %arg4[%c0_68, %166, %c0_69] : memref<1x256x128xf32, #tpu.memory_space<vmem>>, vector<1x1x128xf32>
    %168 = vector.shape_cast %167 : vector<1x1x128xf32> to vector<1x128xf32>
    %c2_i32_70 = arith.constant 2 : i32
    %169 = arith.cmpi sgt, %129, %c2_i32_70 : i32
    %170 = arith.extui %169 : i1 to i32
    %171 = arith.sitofp %170 : i32 to f32
    %172 = vector.broadcast %171 : f32 to vector<1x128xf32>
    %173 = arith.mulf %168, %172 : vector<1x128xf32>
    %174 = arith.addf %160, %173 : vector<1x128xf32>
    %c3_i32_71 = arith.constant 3 : i32
    %175 = arith.addi %131, %c3_i32_71 : i32
    %176 = arith.index_cast %175 : i32 to index
    %177 = memref.load %arg2[%176] : memref<96xi32, #tpu.memory_space<smem>>
    %c0_i32_72 = arith.constant 0 : i32
    %c255_i32_73 = arith.constant 255 : i32
    %178 = arith.maxsi %c0_i32_72, %177 : i32
    %179 = arith.minsi %c255_i32_73, %178 : i32
    %c0_74 = arith.constant 0 : index
    %180 = arith.index_cast %179 : i32 to index
    %c0_75 = arith.constant 0 : index
    %181 = vector.load %arg4[%c0_74, %180, %c0_75] : memref<1x256x128xf32, #tpu.memory_space<vmem>>, vector<1x1x128xf32>
    %182 = vector.shape_cast %181 : vector<1x1x128xf32> to vector<1x128xf32>
    %c3_i32_76 = arith.constant 3 : i32
    %183 = arith.cmpi sgt, %129, %c3_i32_76 : i32
    %184 = arith.extui %183 : i1 to i32
    %185 = arith.sitofp %184 : i32 to f32
    %186 = vector.broadcast %185 : f32 to vector<1x128xf32>
    %187 = arith.mulf %182, %186 : vector<1x128xf32>
    %188 = arith.addf %174, %187 : vector<1x128xf32>
    %c3_i32_77 = arith.constant 3 : i32
    %189 = arith.addi %2, %c3_i32_77 : i32
    %190 = arith.index_cast %189 : i32 to index
    %191 = memref.load %arg3[%190] : memref<24xi32, #tpu.memory_space<smem>>
    %c3_i32_78 = arith.constant 3 : i32
    %192 = arith.addi %2, %c3_i32_78 : i32
    %c4_i32_79 = arith.constant 4 : i32
    %193 = arith.muli %192, %c4_i32_79 : i32
    %cst_80 = arith.constant 0.000000e+00 : f32
    %194 = vector.broadcast %cst_80 : f32 to vector<1x128xf32>
    %c0_i32_81 = arith.constant 0 : i32
    %195 = arith.addi %193, %c0_i32_81 : i32
    %196 = arith.index_cast %195 : i32 to index
    %197 = memref.load %arg2[%196] : memref<96xi32, #tpu.memory_space<smem>>
    %c0_i32_82 = arith.constant 0 : i32
    %c255_i32_83 = arith.constant 255 : i32
    %198 = arith.maxsi %c0_i32_82, %197 : i32
    %199 = arith.minsi %c255_i32_83, %198 : i32
    %c0_84 = arith.constant 0 : index
    %200 = arith.index_cast %199 : i32 to index
    %c0_85 = arith.constant 0 : index
    %201 = vector.load %arg4[%c0_84, %200, %c0_85] : memref<1x256x128xf32, #tpu.memory_space<vmem>>, vector<1x1x128xf32>
    %202 = vector.shape_cast %201 : vector<1x1x128xf32> to vector<1x128xf32>
    %c0_i32_86 = arith.constant 0 : i32
    %203 = arith.cmpi sgt, %191, %c0_i32_86 : i32
    %204 = arith.extui %203 : i1 to i32
    %205 = arith.sitofp %204 : i32 to f32
    %206 = vector.broadcast %205 : f32 to vector<1x128xf32>
    %207 = arith.mulf %202, %206 : vector<1x128xf32>
    %208 = arith.addf %194, %207 : vector<1x128xf32>
    %c1_i32_87 = arith.constant 1 : i32
    %209 = arith.addi %193, %c1_i32_87 : i32
    %210 = arith.index_cast %209 : i32 to index
    %211 = memref.load %arg2[%210] : memref<96xi32, #tpu.memory_space<smem>>
    %c0_i32_88 = arith.constant 0 : i32
    %c255_i32_89 = arith.constant 255 : i32
    %212 = arith.maxsi %c0_i32_88, %211 : i32
    %213 = arith.minsi %c255_i32_89, %212 : i32
    %c0_90 = arith.constant 0 : index
    %214 = arith.index_cast %213 : i32 to index
    %c0_91 = arith.constant 0 : index
    %215 = vector.load %arg4[%c0_90, %214, %c0_91] : memref<1x256x128xf32, #tpu.memory_space<vmem>>, vector<1x1x128xf32>
    %216 = vector.shape_cast %215 : vector<1x1x128xf32> to vector<1x128xf32>
    %c1_i32_92 = arith.constant 1 : i32
    %217 = arith.cmpi sgt, %191, %c1_i32_92 : i32
    %218 = arith.extui %217 : i1 to i32
    %219 = arith.sitofp %218 : i32 to f32
    %220 = vector.broadcast %219 : f32 to vector<1x128xf32>
    %221 = arith.mulf %216, %220 : vector<1x128xf32>
    %222 = arith.addf %208, %221 : vector<1x128xf32>
    %c2_i32_93 = arith.constant 2 : i32
    %223 = arith.addi %193, %c2_i32_93 : i32
    %224 = arith.index_cast %223 : i32 to index
    %225 = memref.load %arg2[%224] : memref<96xi32, #tpu.memory_space<smem>>
    %c0_i32_94 = arith.constant 0 : i32
    %c255_i32_95 = arith.constant 255 : i32
    %226 = arith.maxsi %c0_i32_94, %225 : i32
    %227 = arith.minsi %c255_i32_95, %226 : i32
    %c0_96 = arith.constant 0 : index
    %228 = arith.index_cast %227 : i32 to index
    %c0_97 = arith.constant 0 : index
    %229 = vector.load %arg4[%c0_96, %228, %c0_97] : memref<1x256x128xf32, #tpu.memory_space<vmem>>, vector<1x1x128xf32>
    %230 = vector.shape_cast %229 : vector<1x1x128xf32> to vector<1x128xf32>
    %c2_i32_98 = arith.constant 2 : i32
    %231 = arith.cmpi sgt, %191, %c2_i32_98 : i32
    %232 = arith.extui %231 : i1 to i32
    %233 = arith.sitofp %232 : i32 to f32
    %234 = vector.broadcast %233 : f32 to vector<1x128xf32>
    %235 = arith.mulf %230, %234 : vector<1x128xf32>
    %236 = arith.addf %222, %235 : vector<1x128xf32>
    %c3_i32_99 = arith.constant 3 : i32
    %237 = arith.addi %193, %c3_i32_99 : i32
    %238 = arith.index_cast %237 : i32 to index
    %239 = memref.load %arg2[%238] : memref<96xi32, #tpu.memory_space<smem>>
    %c0_i32_100 = arith.constant 0 : i32
    %c255_i32_101 = arith.constant 255 : i32
    %240 = arith.maxsi %c0_i32_100, %239 : i32
    %241 = arith.minsi %c255_i32_101, %240 : i32
    %c0_102 = arith.constant 0 : index
    %242 = arith.index_cast %241 : i32 to index
    %c0_103 = arith.constant 0 : index
    %243 = vector.load %arg4[%c0_102, %242, %c0_103] : memref<1x256x128xf32, #tpu.memory_space<vmem>>, vector<1x1x128xf32>
    %244 = vector.shape_cast %243 : vector<1x1x128xf32> to vector<1x128xf32>
    %c3_i32_104 = arith.constant 3 : i32
    %245 = arith.cmpi sgt, %191, %c3_i32_104 : i32
    %246 = arith.extui %245 : i1 to i32
    %247 = arith.sitofp %246 : i32 to f32
    %248 = vector.broadcast %247 : f32 to vector<1x128xf32>
    %249 = arith.mulf %244, %248 : vector<1x128xf32>
    %250 = arith.addf %236, %249 : vector<1x128xf32>
    %c4_i32_105 = arith.constant 4 : i32
    %251 = arith.addi %2, %c4_i32_105 : i32
    %252 = arith.index_cast %251 : i32 to index
    %253 = memref.load %arg3[%252] : memref<24xi32, #tpu.memory_space<smem>>
    %c4_i32_106 = arith.constant 4 : i32
    %254 = arith.addi %2, %c4_i32_106 : i32
    %c4_i32_107 = arith.constant 4 : i32
    %255 = arith.muli %254, %c4_i32_107 : i32
    %cst_108 = arith.constant 0.000000e+00 : f32
    %256 = vector.broadcast %cst_108 : f32 to vector<1x128xf32>
    %c0_i32_109 = arith.constant 0 : i32
    %257 = arith.addi %255, %c0_i32_109 : i32
    %258 = arith.index_cast %257 : i32 to index
    %259 = memref.load %arg2[%258] : memref<96xi32, #tpu.memory_space<smem>>
    %c0_i32_110 = arith.constant 0 : i32
    %c255_i32_111 = arith.constant 255 : i32
    %260 = arith.maxsi %c0_i32_110, %259 : i32
    %261 = arith.minsi %c255_i32_111, %260 : i32
    %c0_112 = arith.constant 0 : index
    %262 = arith.index_cast %261 : i32 to index
    %c0_113 = arith.constant 0 : index
    %263 = vector.load %arg4[%c0_112, %262, %c0_113] : memref<1x256x128xf32, #tpu.memory_space<vmem>>, vector<1x1x128xf32>
    %264 = vector.shape_cast %263 : vector<1x1x128xf32> to vector<1x128xf32>
    %c0_i32_114 = arith.constant 0 : i32
    %265 = arith.cmpi sgt, %253, %c0_i32_114 : i32
    %266 = arith.extui %265 : i1 to i32
    %267 = arith.sitofp %266 : i32 to f32
    %268 = vector.broadcast %267 : f32 to vector<1x128xf32>
    %269 = arith.mulf %264, %268 : vector<1x128xf32>
    %270 = arith.addf %256, %269 : vector<1x128xf32>
    %c1_i32_115 = arith.constant 1 : i32
    %271 = arith.addi %255, %c1_i32_115 : i32
    %272 = arith.index_cast %271 : i32 to index
    %273 = memref.load %arg2[%272] : memref<96xi32, #tpu.memory_space<smem>>
    %c0_i32_116 = arith.constant 0 : i32
    %c255_i32_117 = arith.constant 255 : i32
    %274 = arith.maxsi %c0_i32_116, %273 : i32
    %275 = arith.minsi %c255_i32_117, %274 : i32
    %c0_118 = arith.constant 0 : index
    %276 = arith.index_cast %275 : i32 to index
    %c0_119 = arith.constant 0 : index
    %277 = vector.load %arg4[%c0_118, %276, %c0_119] : memref<1x256x128xf32, #tpu.memory_space<vmem>>, vector<1x1x128xf32>
    %278 = vector.shape_cast %277 : vector<1x1x128xf32> to vector<1x128xf32>
    %c1_i32_120 = arith.constant 1 : i32
    %279 = arith.cmpi sgt, %253, %c1_i32_120 : i32
    %280 = arith.extui %279 : i1 to i32
    %281 = arith.sitofp %280 : i32 to f32
    %282 = vector.broadcast %281 : f32 to vector<1x128xf32>
    %283 = arith.mulf %278, %282 : vector<1x128xf32>
    %284 = arith.addf %270, %283 : vector<1x128xf32>
    %c2_i32_121 = arith.constant 2 : i32
    %285 = arith.addi %255, %c2_i32_121 : i32
    %286 = arith.index_cast %285 : i32 to index
    %287 = memref.load %arg2[%286] : memref<96xi32, #tpu.memory_space<smem>>
    %c0_i32_122 = arith.constant 0 : i32
    %c255_i32_123 = arith.constant 255 : i32
    %288 = arith.maxsi %c0_i32_122, %287 : i32
    %289 = arith.minsi %c255_i32_123, %288 : i32
    %c0_124 = arith.constant 0 : index
    %290 = arith.index_cast %289 : i32 to index
    %c0_125 = arith.constant 0 : index
    %291 = vector.load %arg4[%c0_124, %290, %c0_125] : memref<1x256x128xf32, #tpu.memory_space<vmem>>, vector<1x1x128xf32>
    %292 = vector.shape_cast %291 : vector<1x1x128xf32> to vector<1x128xf32>
    %c2_i32_126 = arith.constant 2 : i32
    %293 = arith.cmpi sgt, %253, %c2_i32_126 : i32
    %294 = arith.extui %293 : i1 to i32
    %295 = arith.sitofp %294 : i32 to f32
    %296 = vector.broadcast %295 : f32 to vector<1x128xf32>
    %297 = arith.mulf %292, %296 : vector<1x128xf32>
    %298 = arith.addf %284, %297 : vector<1x128xf32>
    %c3_i32_127 = arith.constant 3 : i32
    %299 = arith.addi %255, %c3_i32_127 : i32
    %300 = arith.index_cast %299 : i32 to index
    %301 = memref.load %arg2[%300] : memref<96xi32, #tpu.memory_space<smem>>
    %c0_i32_128 = arith.constant 0 : i32
    %c255_i32_129 = arith.constant 255 : i32
    %302 = arith.maxsi %c0_i32_128, %301 : i32
    %303 = arith.minsi %c255_i32_129, %302 : i32
    %c0_130 = arith.constant 0 : index
    %304 = arith.index_cast %303 : i32 to index
    %c0_131 = arith.constant 0 : index
    %305 = vector.load %arg4[%c0_130, %304, %c0_131] : memref<1x256x128xf32, #tpu.memory_space<vmem>>, vector<1x1x128xf32>
    %306 = vector.shape_cast %305 : vector<1x1x128xf32> to vector<1x128xf32>
    %c3_i32_132 = arith.constant 3 : i32
    %307 = arith.cmpi sgt, %253, %c3_i32_132 : i32
    %308 = arith.extui %307 : i1 to i32
    %309 = arith.sitofp %308 : i32 to f32
    %310 = vector.broadcast %309 : f32 to vector<1x128xf32>
    %311 = arith.mulf %306, %310 : vector<1x128xf32>
    %312 = arith.addf %298, %311 : vector<1x128xf32>
    %c5_i32 = arith.constant 5 : i32
    %313 = arith.addi %2, %c5_i32 : i32
    %314 = arith.index_cast %313 : i32 to index
    %315 = memref.load %arg3[%314] : memref<24xi32, #tpu.memory_space<smem>>
    %c5_i32_133 = arith.constant 5 : i32
    %316 = arith.addi %2, %c5_i32_133 : i32
    %c4_i32_134 = arith.constant 4 : i32
    %317 = arith.muli %316, %c4_i32_134 : i32
    %cst_135 = arith.constant 0.000000e+00 : f32
    %318 = vector.broadcast %cst_135 : f32 to vector<1x128xf32>
    %c0_i32_136 = arith.constant 0 : i32
    %319 = arith.addi %317, %c0_i32_136 : i32
    %320 = arith.index_cast %319 : i32 to index
    %321 = memref.load %arg2[%320] : memref<96xi32, #tpu.memory_space<smem>>
    %c0_i32_137 = arith.constant 0 : i32
    %c255_i32_138 = arith.constant 255 : i32
    %322 = arith.maxsi %c0_i32_137, %321 : i32
    %323 = arith.minsi %c255_i32_138, %322 : i32
    %c0_139 = arith.constant 0 : index
    %324 = arith.index_cast %323 : i32 to index
    %c0_140 = arith.constant 0 : index
    %325 = vector.load %arg4[%c0_139, %324, %c0_140] : memref<1x256x128xf32, #tpu.memory_space<vmem>>, vector<1x1x128xf32>
    %326 = vector.shape_cast %325 : vector<1x1x128xf32> to vector<1x128xf32>
    %c0_i32_141 = arith.constant 0 : i32
    %327 = arith.cmpi sgt, %315, %c0_i32_141 : i32
    %328 = arith.extui %327 : i1 to i32
    %329 = arith.sitofp %328 : i32 to f32
    %330 = vector.broadcast %329 : f32 to vector<1x128xf32>
    %331 = arith.mulf %326, %330 : vector<1x128xf32>
    %332 = arith.addf %318, %331 : vector<1x128xf32>
    %c1_i32_142 = arith.constant 1 : i32
    %333 = arith.addi %317, %c1_i32_142 : i32
    %334 = arith.index_cast %333 : i32 to index
    %335 = memref.load %arg2[%334] : memref<96xi32, #tpu.memory_space<smem>>
    %c0_i32_143 = arith.constant 0 : i32
    %c255_i32_144 = arith.constant 255 : i32
    %336 = arith.maxsi %c0_i32_143, %335 : i32
    %337 = arith.minsi %c255_i32_144, %336 : i32
    %c0_145 = arith.constant 0 : index
    %338 = arith.index_cast %337 : i32 to index
    %c0_146 = arith.constant 0 : index
    %339 = vector.load %arg4[%c0_145, %338, %c0_146] : memref<1x256x128xf32, #tpu.memory_space<vmem>>, vector<1x1x128xf32>
    %340 = vector.shape_cast %339 : vector<1x1x128xf32> to vector<1x128xf32>
    %c1_i32_147 = arith.constant 1 : i32
    %341 = arith.cmpi sgt, %315, %c1_i32_147 : i32
    %342 = arith.extui %341 : i1 to i32
    %343 = arith.sitofp %342 : i32 to f32
    %344 = vector.broadcast %343 : f32 to vector<1x128xf32>
    %345 = arith.mulf %340, %344 : vector<1x128xf32>
    %346 = arith.addf %332, %345 : vector<1x128xf32>
    %c2_i32_148 = arith.constant 2 : i32
    %347 = arith.addi %317, %c2_i32_148 : i32
    %348 = arith.index_cast %347 : i32 to index
    %349 = memref.load %arg2[%348] : memref<96xi32, #tpu.memory_space<smem>>
    %c0_i32_149 = arith.constant 0 : i32
    %c255_i32_150 = arith.constant 255 : i32
    %350 = arith.maxsi %c0_i32_149, %349 : i32
    %351 = arith.minsi %c255_i32_150, %350 : i32
    %c0_151 = arith.constant 0 : index
    %352 = arith.index_cast %351 : i32 to index
    %c0_152 = arith.constant 0 : index
    %353 = vector.load %arg4[%c0_151, %352, %c0_152] : memref<1x256x128xf32, #tpu.memory_space<vmem>>, vector<1x1x128xf32>
    %354 = vector.shape_cast %353 : vector<1x1x128xf32> to vector<1x128xf32>
    %c2_i32_153 = arith.constant 2 : i32
    %355 = arith.cmpi sgt, %315, %c2_i32_153 : i32
    %356 = arith.extui %355 : i1 to i32
    %357 = arith.sitofp %356 : i32 to f32
    %358 = vector.broadcast %357 : f32 to vector<1x128xf32>
    %359 = arith.mulf %354, %358 : vector<1x128xf32>
    %360 = arith.addf %346, %359 : vector<1x128xf32>
    %c3_i32_154 = arith.constant 3 : i32
    %361 = arith.addi %317, %c3_i32_154 : i32
    %362 = arith.index_cast %361 : i32 to index
    %363 = memref.load %arg2[%362] : memref<96xi32, #tpu.memory_space<smem>>
    %c0_i32_155 = arith.constant 0 : i32
    %c255_i32_156 = arith.constant 255 : i32
    %364 = arith.maxsi %c0_i32_155, %363 : i32
    %365 = arith.minsi %c255_i32_156, %364 : i32
    %c0_157 = arith.constant 0 : index
    %366 = arith.index_cast %365 : i32 to index
    %c0_158 = arith.constant 0 : index
    %367 = vector.load %arg4[%c0_157, %366, %c0_158] : memref<1x256x128xf32, #tpu.memory_space<vmem>>, vector<1x1x128xf32>
    %368 = vector.shape_cast %367 : vector<1x1x128xf32> to vector<1x128xf32>
    %c3_i32_159 = arith.constant 3 : i32
    %369 = arith.cmpi sgt, %315, %c3_i32_159 : i32
    %370 = arith.extui %369 : i1 to i32
    %371 = arith.sitofp %370 : i32 to f32
    %372 = vector.broadcast %371 : f32 to vector<1x128xf32>
    %373 = arith.mulf %368, %372 : vector<1x128xf32>
    %374 = arith.addf %360, %373 : vector<1x128xf32>
    %c6_i32 = arith.constant 6 : i32
    %375 = arith.addi %2, %c6_i32 : i32
    %376 = arith.index_cast %375 : i32 to index
    %377 = memref.load %arg3[%376] : memref<24xi32, #tpu.memory_space<smem>>
    %c6_i32_160 = arith.constant 6 : i32
    %378 = arith.addi %2, %c6_i32_160 : i32
    %c4_i32_161 = arith.constant 4 : i32
    %379 = arith.muli %378, %c4_i32_161 : i32
    %cst_162 = arith.constant 0.000000e+00 : f32
    %380 = vector.broadcast %cst_162 : f32 to vector<1x128xf32>
    %c0_i32_163 = arith.constant 0 : i32
    %381 = arith.addi %379, %c0_i32_163 : i32
    %382 = arith.index_cast %381 : i32 to index
    %383 = memref.load %arg2[%382] : memref<96xi32, #tpu.memory_space<smem>>
    %c0_i32_164 = arith.constant 0 : i32
    %c255_i32_165 = arith.constant 255 : i32
    %384 = arith.maxsi %c0_i32_164, %383 : i32
    %385 = arith.minsi %c255_i32_165, %384 : i32
    %c0_166 = arith.constant 0 : index
    %386 = arith.index_cast %385 : i32 to index
    %c0_167 = arith.constant 0 : index
    %387 = vector.load %arg4[%c0_166, %386, %c0_167] : memref<1x256x128xf32, #tpu.memory_space<vmem>>, vector<1x1x128xf32>
    %388 = vector.shape_cast %387 : vector<1x1x128xf32> to vector<1x128xf32>
    %c0_i32_168 = arith.constant 0 : i32
    %389 = arith.cmpi sgt, %377, %c0_i32_168 : i32
    %390 = arith.extui %389 : i1 to i32
    %391 = arith.sitofp %390 : i32 to f32
    %392 = vector.broadcast %391 : f32 to vector<1x128xf32>
    %393 = arith.mulf %388, %392 : vector<1x128xf32>
    %394 = arith.addf %380, %393 : vector<1x128xf32>
    %c1_i32_169 = arith.constant 1 : i32
    %395 = arith.addi %379, %c1_i32_169 : i32
    %396 = arith.index_cast %395 : i32 to index
    %397 = memref.load %arg2[%396] : memref<96xi32, #tpu.memory_space<smem>>
    %c0_i32_170 = arith.constant 0 : i32
    %c255_i32_171 = arith.constant 255 : i32
    %398 = arith.maxsi %c0_i32_170, %397 : i32
    %399 = arith.minsi %c255_i32_171, %398 : i32
    %c0_172 = arith.constant 0 : index
    %400 = arith.index_cast %399 : i32 to index
    %c0_173 = arith.constant 0 : index
    %401 = vector.load %arg4[%c0_172, %400, %c0_173] : memref<1x256x128xf32, #tpu.memory_space<vmem>>, vector<1x1x128xf32>
    %402 = vector.shape_cast %401 : vector<1x1x128xf32> to vector<1x128xf32>
    %c1_i32_174 = arith.constant 1 : i32
    %403 = arith.cmpi sgt, %377, %c1_i32_174 : i32
    %404 = arith.extui %403 : i1 to i32
    %405 = arith.sitofp %404 : i32 to f32
    %406 = vector.broadcast %405 : f32 to vector<1x128xf32>
    %407 = arith.mulf %402, %406 : vector<1x128xf32>
    %408 = arith.addf %394, %407 : vector<1x128xf32>
    %c2_i32_175 = arith.constant 2 : i32
    %409 = arith.addi %379, %c2_i32_175 : i32
    %410 = arith.index_cast %409 : i32 to index
    %411 = memref.load %arg2[%410] : memref<96xi32, #tpu.memory_space<smem>>
    %c0_i32_176 = arith.constant 0 : i32
    %c255_i32_177 = arith.constant 255 : i32
    %412 = arith.maxsi %c0_i32_176, %411 : i32
    %413 = arith.minsi %c255_i32_177, %412 : i32
    %c0_178 = arith.constant 0 : index
    %414 = arith.index_cast %413 : i32 to index
    %c0_179 = arith.constant 0 : index
    %415 = vector.load %arg4[%c0_178, %414, %c0_179] : memref<1x256x128xf32, #tpu.memory_space<vmem>>, vector<1x1x128xf32>
    %416 = vector.shape_cast %415 : vector<1x1x128xf32> to vector<1x128xf32>
    %c2_i32_180 = arith.constant 2 : i32
    %417 = arith.cmpi sgt, %377, %c2_i32_180 : i32
    %418 = arith.extui %417 : i1 to i32
    %419 = arith.sitofp %418 : i32 to f32
    %420 = vector.broadcast %419 : f32 to vector<1x128xf32>
    %421 = arith.mulf %416, %420 : vector<1x128xf32>
    %422 = arith.addf %408, %421 : vector<1x128xf32>
    %c3_i32_181 = arith.constant 3 : i32
    %423 = arith.addi %379, %c3_i32_181 : i32
    %424 = arith.index_cast %423 : i32 to index
    %425 = memref.load %arg2[%424] : memref<96xi32, #tpu.memory_space<smem>>
    %c0_i32_182 = arith.constant 0 : i32
    %c255_i32_183 = arith.constant 255 : i32
    %426 = arith.maxsi %c0_i32_182, %425 : i32
    %427 = arith.minsi %c255_i32_183, %426 : i32
    %c0_184 = arith.constant 0 : index
    %428 = arith.index_cast %427 : i32 to index
    %c0_185 = arith.constant 0 : index
    %429 = vector.load %arg4[%c0_184, %428, %c0_185] : memref<1x256x128xf32, #tpu.memory_space<vmem>>, vector<1x1x128xf32>
    %430 = vector.shape_cast %429 : vector<1x1x128xf32> to vector<1x128xf32>
    %c3_i32_186 = arith.constant 3 : i32
    %431 = arith.cmpi sgt, %377, %c3_i32_186 : i32
    %432 = arith.extui %431 : i1 to i32
    %433 = arith.sitofp %432 : i32 to f32
    %434 = vector.broadcast %433 : f32 to vector<1x128xf32>
    %435 = arith.mulf %430, %434 : vector<1x128xf32>
    %436 = arith.addf %422, %435 : vector<1x128xf32>
    %c7_i32 = arith.constant 7 : i32
    %437 = arith.addi %2, %c7_i32 : i32
    %438 = arith.index_cast %437 : i32 to index
    %439 = memref.load %arg3[%438] : memref<24xi32, #tpu.memory_space<smem>>
    %c7_i32_187 = arith.constant 7 : i32
    %440 = arith.addi %2, %c7_i32_187 : i32
    %c4_i32_188 = arith.constant 4 : i32
    %441 = arith.muli %440, %c4_i32_188 : i32
    %cst_189 = arith.constant 0.000000e+00 : f32
    %442 = vector.broadcast %cst_189 : f32 to vector<1x128xf32>
    %c0_i32_190 = arith.constant 0 : i32
    %443 = arith.addi %441, %c0_i32_190 : i32
    %444 = arith.index_cast %443 : i32 to index
    %445 = memref.load %arg2[%444] : memref<96xi32, #tpu.memory_space<smem>>
    %c0_i32_191 = arith.constant 0 : i32
    %c255_i32_192 = arith.constant 255 : i32
    %446 = arith.maxsi %c0_i32_191, %445 : i32
    %447 = arith.minsi %c255_i32_192, %446 : i32
    %c0_193 = arith.constant 0 : index
    %448 = arith.index_cast %447 : i32 to index
    %c0_194 = arith.constant 0 : index
    %449 = vector.load %arg4[%c0_193, %448, %c0_194] : memref<1x256x128xf32, #tpu.memory_space<vmem>>, vector<1x1x128xf32>
    %450 = vector.shape_cast %449 : vector<1x1x128xf32> to vector<1x128xf32>
    %c0_i32_195 = arith.constant 0 : i32
    %451 = arith.cmpi sgt, %439, %c0_i32_195 : i32
    %452 = arith.extui %451 : i1 to i32
    %453 = arith.sitofp %452 : i32 to f32
    %454 = vector.broadcast %453 : f32 to vector<1x128xf32>
    %455 = arith.mulf %450, %454 : vector<1x128xf32>
    %456 = arith.addf %442, %455 : vector<1x128xf32>
    %c1_i32_196 = arith.constant 1 : i32
    %457 = arith.addi %441, %c1_i32_196 : i32
    %458 = arith.index_cast %457 : i32 to index
    %459 = memref.load %arg2[%458] : memref<96xi32, #tpu.memory_space<smem>>
    %c0_i32_197 = arith.constant 0 : i32
    %c255_i32_198 = arith.constant 255 : i32
    %460 = arith.maxsi %c0_i32_197, %459 : i32
    %461 = arith.minsi %c255_i32_198, %460 : i32
    %c0_199 = arith.constant 0 : index
    %462 = arith.index_cast %461 : i32 to index
    %c0_200 = arith.constant 0 : index
    %463 = vector.load %arg4[%c0_199, %462, %c0_200] : memref<1x256x128xf32, #tpu.memory_space<vmem>>, vector<1x1x128xf32>
    %464 = vector.shape_cast %463 : vector<1x1x128xf32> to vector<1x128xf32>
    %c1_i32_201 = arith.constant 1 : i32
    %465 = arith.cmpi sgt, %439, %c1_i32_201 : i32
    %466 = arith.extui %465 : i1 to i32
    %467 = arith.sitofp %466 : i32 to f32
    %468 = vector.broadcast %467 : f32 to vector<1x128xf32>
    %469 = arith.mulf %464, %468 : vector<1x128xf32>
    %470 = arith.addf %456, %469 : vector<1x128xf32>
    %c2_i32_202 = arith.constant 2 : i32
    %471 = arith.addi %441, %c2_i32_202 : i32
    %472 = arith.index_cast %471 : i32 to index
    %473 = memref.load %arg2[%472] : memref<96xi32, #tpu.memory_space<smem>>
    %c0_i32_203 = arith.constant 0 : i32
    %c255_i32_204 = arith.constant 255 : i32
    %474 = arith.maxsi %c0_i32_203, %473 : i32
    %475 = arith.minsi %c255_i32_204, %474 : i32
    %c0_205 = arith.constant 0 : index
    %476 = arith.index_cast %475 : i32 to index
    %c0_206 = arith.constant 0 : index
    %477 = vector.load %arg4[%c0_205, %476, %c0_206] : memref<1x256x128xf32, #tpu.memory_space<vmem>>, vector<1x1x128xf32>
    %478 = vector.shape_cast %477 : vector<1x1x128xf32> to vector<1x128xf32>
    %c2_i32_207 = arith.constant 2 : i32
    %479 = arith.cmpi sgt, %439, %c2_i32_207 : i32
    %480 = arith.extui %479 : i1 to i32
    %481 = arith.sitofp %480 : i32 to f32
    %482 = vector.broadcast %481 : f32 to vector<1x128xf32>
    %483 = arith.mulf %478, %482 : vector<1x128xf32>
    %484 = arith.addf %470, %483 : vector<1x128xf32>
    %c3_i32_208 = arith.constant 3 : i32
    %485 = arith.addi %441, %c3_i32_208 : i32
    %486 = arith.index_cast %485 : i32 to index
    %487 = memref.load %arg2[%486] : memref<96xi32, #tpu.memory_space<smem>>
    %c0_i32_209 = arith.constant 0 : i32
    %c255_i32_210 = arith.constant 255 : i32
    %488 = arith.maxsi %c0_i32_209, %487 : i32
    %489 = arith.minsi %c255_i32_210, %488 : i32
    %c0_211 = arith.constant 0 : index
    %490 = arith.index_cast %489 : i32 to index
    %c0_212 = arith.constant 0 : index
    %491 = vector.load %arg4[%c0_211, %490, %c0_212] : memref<1x256x128xf32, #tpu.memory_space<vmem>>, vector<1x1x128xf32>
    %492 = vector.shape_cast %491 : vector<1x1x128xf32> to vector<1x128xf32>
    %c3_i32_213 = arith.constant 3 : i32
    %493 = arith.cmpi sgt, %439, %c3_i32_213 : i32
    %494 = arith.extui %493 : i1 to i32
    %495 = arith.sitofp %494 : i32 to f32
    %496 = vector.broadcast %495 : f32 to vector<1x128xf32>
    %497 = arith.mulf %492, %496 : vector<1x128xf32>
    %498 = arith.addf %484, %497 : vector<1x128xf32>
    %499 = tpu.concatenate %64, %126, %188, %250, %312, %374, %436, %498 in 0 : vector<1x128xf32>, vector<1x128xf32>, vector<1x128xf32>, vector<1x128xf32>, vector<1x128xf32>, vector<1x128xf32>, vector<1x128xf32>, vector<1x128xf32> -> vector<8x128xf32>
    %c0_214 = arith.constant 0 : index
    %c0_215 = arith.constant 0 : index
    %500 = vector.load %arg5[%c0_214, %c0_215] : memref<8x128xf32, #tpu.memory_space<vmem>>, vector<8x128xf32>
    tpu.vector_store %arg5[%c0_214, %c0_215], %499 {strides = array<i32>} : memref<8x128xf32, #tpu.memory_space<vmem>>, vector<8x128xf32>,
    return
  }
  func.func @transform_0(%arg0: i32, %arg1: i32, %arg2: memref<96xi32, #tpu.memory_space<smem>>, %arg3: memref<24xi32, #tpu.memory_space<smem>>) -> (i32, i32, i32) {
    %c0_i32 = arith.constant 0 : i32
    %c0_i32_0 = arith.constant 0 : i32
    %c0_i32_1 = arith.constant 0 : i32
    return %arg0, %c0_i32, %c0_i32_0 : i32, i32, i32
  }
  func.func @transform_1(%arg0: i32, %arg1: i32, %arg2: memref<96xi32, #tpu.memory_space<smem>>, %arg3: memref<24xi32, #tpu.memory_space<smem>>) -> (i32, i32) {
    %c0_i32 = arith.constant 0 : i32
    return %arg1, %arg0 : i32, i32
  }
}

</mosaic_0001>

<llo_original>
// kernel: tpu_custom_call.1
$region0: #{tpu_custom_call.1}
  #allocation0 [shape = 'u32[]', space=smem, size = 0x4, offset = 0x4, fixed_abs, tag = 'smem constant byte address 0x4 - core index']
  #allocation1 [shape = 'u32[144,128]{1,0:T(1,128)}', space=vmem, size = 0x12000, scoped, tag = 'internal scratch']
  #allocation2 [shape = 's32[1]{0}', space=sflag, size = 0x4, scoped, tag = 'scoped memory for tpu_custom_call.1']
  #allocation3 [shape = 'u8[512]{0}', space=smem, size = 0x200, scoped, tag = 'prefetched SMEM operand 0']
  #allocation4 [shape = 'u8[512]{0}', space=smem, size = 0x200, scoped, tag = 'prefetched SMEM operand 1']
  %s0 = inlined_call_operand.hbm [shape: s32[96], index: 0, kind: input, shape index: {}]
  %s1 = inlined_call_operand.vmem [shape: s32[24], index: 1, kind: input, shape index: {}]
  %s2 = inlined_call_operand.hbm [shape: f32[3,256,128], index: 2, kind: input, shape index: {}]
  %s3 = inlined_call_operand.hbm [shape: f32[8,384], index: 3, kind: output, shape index: {}]
  %s4 = sld [smem:[#allocation0]]
  $region41: #{tpu_custom_call.1} parent=0
    _
  %s6 = ssub.s32 1, %s4
  %s7 = scalar_select 0, %s6, %s4
  %9 = dma.hbm_to_smem %s0, 16, [#allocation3], [#allocation2]
  %s10 = sshll.u32 %s1, 4
  %s11 = int_to_ptr.vmem [resolvable:$true] %s10
  %13 = dma.vmem_to_smem %s11, 16, [#allocation4], [#allocation2]
  %14 = dma.done [#allocation2], 32
  %15 = sfence
  $region1: #{tpu_custom_call.1} parent=0
    #allocation5 [shape = 'u8[262144]{0}', space=vmem, size = 0x40000, scoped, tag = 'input window, operand 2']
    #allocation6 [shape = 's32[2]{0}', space=sflag, size = 0x8, scoped, tag = 'scoped memory for tpu_custom_call.1']
    #allocation7 [shape = 's32[2]{0}', space=sflag, size = 0x8, scoped, tag = 'scoped memory for tpu_custom_call.1']
    #allocation8 [shape = 'u8[8192]{0}', space=vmem, size = 0x2000, scoped, tag = 'output window, operand 0']
    %16 = vsyncpa [#allocation6], 0
    %s17 = scalar_lea.sflag [#allocation6], 1
    %18 = vsyncpa %s17, 0
    %19 = vsyncpa [#allocation7], 0
    %s20 = scalar_lea.sflag [#allocation7], 1
    %21 = vsyncpa %s20, 0
    loop: start=0, step=1, limit=5
    $region2: #{tpu_custom_call.1} parent=1 // loop_pre_header
      _
    $region3: #{tpu_custom_call.1} parent=1 // loop_header
      %s23 = sphi 0, %s27
      %p24 = scmp.ge.s32.totalorder %s23, 5
      %s30 = sphi 0, %s42
      %s31 = sphi 0, %s38
      %s32 = sphi 0, %s30
      %s33 = sphi 0, %s31
      %s34 = sphi 0, %s32
      %s35 = sphi 0, %s33
      %s45 = sphi 0, %s47
      %s48 = sphi 0, %s45
      %s49 = sphi 0, %s48
      %s65 = sphi 0, %s49
      %s73 = sphi 0, %s75
      %s76 = sphi 0, %s73
      %s77 = sphi 0, %s76
      %s93 = sphi 0, %s77
    $region4: #{tpu_custom_call.1} parent=1 // loop_header_branch
      %26 = sbr.rel (%p24) target = $region8
    $region5: #{tpu_custom_call.1} parent=1 // loop_body
      %s28 = ssub.s32 %s23, 1
      %s29 = ssub.s32 %s23, 2
      %s36 = sadd.s32 1, %s31
      %p37 = scmp.ge.s32.totalorder %s36, 1
      %s38 = scalar_select %p37, 0, %s36
      %s39 = sadd.s32 1, %s30
      %s40 = scalar_select %p37, %s39, %s30
      %p41 = scmp.ge.s32.totalorder %s40, 3
      %s42 = scalar_select %p41, 0, %s40
      %s43 = ssub.s32 %s30, %s42
      %p44 = scmp.eq.s32.totalorder %s43, 0
      %s46 = sadd.s32 %s45, 1
      %s47 = scalar_select %p44, %s45, %s46
      %p50 = pneg %p44
      %p51 = scmp.eq.s32.totalorder %s23, 2
      %p52 = por %p50, %p51
      %p53 = scmp.ne.s32.totalorder %s45, %s48
      %p54 = scmp.eq.s32.totalorder %s23, 0
      %p55 = por %p53, %p54
      %p56 = scmp.ne.s32.totalorder %s45, %s48
      %p57 = scmp.eq.s32.totalorder %s28, 2
      %p58 = por %p56, %p57
      %p59 = scmp.ne.s32.totalorder %s48, %s49
      %p60 = scmp.eq.s32.totalorder %s28, 0
      %p61 = por %p59, %p60
      %p62 = scmp.ne.s32.totalorder %s48, %s49
      %p63 = scmp.eq.s32.totalorder %s29, 2
      %p64 = por %p62, %p63
      %p66 = scmp.ne.s32.totalorder %s49, %s65
      %p67 = scmp.eq.s32.totalorder %s29, 0
      %p68 = por %p66, %p67
      %s69 = ssub.s32 %s31, %s38
      %s70 = ssub.s32 %s30, %s42
      %s71 = sor.u32 %s69, %s70
      %p72 = scmp.eq.s32.totalorder %s71, 0
      %s74 = sadd.s32 %s73, 1
      %s75 = scalar_select %p72, %s73, %s74
      %p78 = pneg %p72
      %p79 = scmp.eq.s32.totalorder %s23, 2
      %p80 = por %p78, %p79
      %p81 = scmp.ne.s32.totalorder %s73, %s76
      %p82 = scmp.eq.s32.totalorder %s23, 0
      %p83 = por %p81, %p82
      %p84 = scmp.ne.s32.totalorder %s73, %s76
      %p85 = scmp.eq.s32.totalorder %s28, 2
      %p86 = por %p84, %p85
      %p87 = scmp.ne.s32.totalorder %s76, %s77
      %p88 = scmp.eq.s32.totalorder %s28, 0
      %p89 = por %p87, %p88
      %p90 = scmp.ne.s32.totalorder %s76, %s77
      %p91 = scmp.eq.s32.totalorder %s29, 2
      %p92 = por %p90, %p91
      %p94 = scmp.ne.s32.totalorder %s77, %s93
      %p95 = scmp.eq.s32.totalorder %s29, 0
      %p96 = por %p94, %p95
      %p97 = scmp.le.s32.totalorder 1, %s23
      %p98 = scmp.lt.s32.totalorder %s23, 4
      %p99 = pnand %p97, %p98
      %p100 = pneg %p99
      // Predicated region
      $region9: #{tpu_custom_call.1} parent=5 // pred_check
        _
      $region10: #{tpu_custom_call.1} parent=5 // pred_check_branch
        %102 = sbr.rel (%p99) target = $region12
      $region11: #{tpu_custom_call.1} parent=5 // pred_region
        %s103 = ssub.s32 %s23, 1
      $region12: #{tpu_custom_call.1} parent=5 // pred_fallthru
        _
      %p104 = scmp.lt.s32.totalorder %s23, 3
      // Predicated region
      $region13: #{tpu_custom_call.1} parent=5 // pred_check
        %p105 = pneg %p104
      $region14: #{tpu_custom_call.1} parent=5 // pred_check_branch
        %107 = sbr.rel (%p105) target = $region16
      $region15: #{tpu_custom_call.1} parent=5 // pred_region
        // Predicated region
        $region17: #{tpu_custom_call.1} parent=15 // pred_check
          %p108 = pneg %p55
        $region18: #{tpu_custom_call.1} parent=15 // pred_check_branch
          %110 = sbr.rel (%p108) target = $region20
        $region19: #{tpu_custom_call.1} parent=15 // pred_region
          %s111 = sand.u32 %s45, 1
          %s112 = scalar_lea.sflag [#allocation6], %s111
          %s113 = sand.u32 %s45, 1
          %s114 = smul.addr %s113, 256
          %s115 = scalar_lea.vmem [#allocation5], %s114
          %s117 = ssub.s32 4096, 4096
          %118 = vsyncadd %s112, %s117
          %s119 = smul.addr %s30, 32
          %s120 = smul.addr %s119, 128
          %s121 = scalar_lea.hbm %s2, %s120
          %s122 = sshll.u32 %s115, 4
          %s123 = int_to_ptr.vmem [resolvable:$true] %s122
          %128 = dma.hbm_to_vmem [thread:$0]  %s121, 4096, %s123, %s112, 128, 128, 8
        $region20: #{tpu_custom_call.1} parent=15 // pred_fallthru
          _
      $region16: #{tpu_custom_call.1} parent=5 // pred_fallthru
        _
      %p129 = scmp.le.s32.totalorder 1, %s23
      %p130 = scmp.lt.s32.totalorder %s23, 4
      %p131 = pnand %p129, %p130
      %p132 = pneg %p131
      // Predicated region
      $region21: #{tpu_custom_call.1} parent=5 // pred_check
        _
      $region22: #{tpu_custom_call.1} parent=5 // pred_check_branch
        %134 = sbr.rel (%p131) target = $region24
      $region23: #{tpu_custom_call.1} parent=5 // pred_region
        %s135 = ssub.s32 %s23, 1
        %s136 = sand.u32 %s48, 1
        %s137 = scalar_lea.sflag [#allocation6], %s136
        %s138 = sand.u32 %s48, 1
        %s139 = smul.addr %s138, 256
        %s140 = scalar_lea.vmem [#allocation5], %s139
        // Predicated region
        $region25: #{tpu_custom_call.1} parent=23 // pred_check
          %p141 = pneg %p61
        $region26: #{tpu_custom_call.1} parent=23 // pred_check_branch
          %143 = sbr.rel (%p141) target = $region28
        $region27: #{tpu_custom_call.1} parent=23 // pred_region
          %144 = dma.done %s137, 4096
        $region28: #{tpu_custom_call.1} parent=23 // pred_fallthru
          _
        %s145 = sand.u32 %s48, 1
        %s146 = scalar_lea.sflag [#allocation6], %s145
        %s147 = sand.u32 %s48, 1
        %s148 = smul.addr %s147, 256
        %s149 = scalar_lea.vmem [#allocation5], %s148
        %p150 = pneg %p61
        %p151 = pneg %p58
        %p152 = pneg %p89
        %p153 = pneg %p86
        %s154 = sand.u32 %s76, 1
        %s155 = scalar_lea.sflag [#allocation7], %s154
        %s156 = sand.u32 %s76, 1
        %s157 = smul.addr %s156, 8
        %s158 = scalar_lea.vmem [#allocation8], %s157
        %s159 = smul.u32 %s32, 8
        %s160 = smul.u32 %s33, 8
        %s161 = sadd.s32 %s159, %s160
        %s162 = sld [smem:[#allocation4 + %s161]]
        %s163 = smul.u32 %s161, 4
        %s164 = sld [smem:[#allocation3 + %s163]]
        %p165 = scmp.gt.s32.totalorder %s164, 0
        %s166 = scalar_select %p165, %s164, 0
        %p167 = scmp.lt.s32.totalorder %s166, 255
        %s168 = scalar_select %p167, %s166, 255
        %s169 = scalar_lea.vmem %s140, %s168 [#allocation5]
        %v170 = vld [vmem:[%s169] sm:$0x1]
        %p171 = scmp.gt.s32.totalorder %s162, 0
        %s172 = scalar_select %p171, 1, 0
        %s173 = scvt.s32.f32 %s172
        %v174 = vstv %s173
        %v175 = vmul.f32 %v170, %v174
        %v176 = vadd.f32 %v175, 0.0
        %s177 = sadd.s32 %s163, 1
        %s178 = sld [smem:[#allocation3 + %s177]]
        %p179 = scmp.gt.s32.totalorder %s178, 0
        %s180 = scalar_select %p179, %s178, 0
        %p181 = scmp.lt.s32.totalorder %s180, 255
        %s182 = scalar_select %p181, %s180, 255
        %s183 = scalar_lea.vmem %s140, %s182 [#allocation5]
        %v184 = vld [vmem:[%s183] sm:$0x1]
        %p185 = scmp.gt.s32.totalorder %s162, 1
        %s186 = scalar_select %p185, 1, 0
        %s187 = scvt.s32.f32 %s186
        %v188 = vstv %s187
        %v189 = vmul.f32 %v184, %v188
        %v190 = vadd.f32 %v176, %v189
        %s191 = sadd.s32 %s163, 2
        %s192 = sld [smem:[#allocation3 + %s191]]
        %p193 = scmp.gt.s32.totalorder %s192, 0
        %s194 = scalar_select %p193, %s192, 0
        %p195 = scmp.lt.s32.totalorder %s194, 255
        %s196 = scalar_select %p195, %s194, 255
        %s197 = scalar_lea.vmem %s140, %s196 [#allocation5]
        %v198 = vld [vmem:[%s197] sm:$0x1]
        %p199 = scmp.gt.s32.totalorder %s162, 2
        %s200 = scalar_select %p199, 1, 0
        %s201 = scvt.s32.f32 %s200
        %v202 = vstv %s201
        %v203 = vmul.f32 %v198, %v202
        %v204 = vadd.f32 %v190, %v203
        %s205 = sadd.s32 %s163, 3
        %s206 = sld [smem:[#allocation3 + %s205]]
        %p207 = scmp.gt.s32.totalorder %s206, 0
        %s208 = scalar_select %p207, %s206, 0
        %p209 = scmp.lt.s32.totalorder %s208, 255
        %s210 = scalar_select %p209, %s208, 255
        %s211 = scalar_lea.vmem %s140, %s210 [#allocation5]
        %v212 = vld [vmem:[%s211] sm:$0x1]
        %p213 = scmp.gt.s32.totalorder %s162, 3
        %s214 = scalar_select %p213, 1, 0
        %s215 = scvt.s32.f32 %s214
        %v216 = vstv %s215
        %v217 = vmul.f32 %v212, %v216
        %v218 = vadd.f32 %v204, %v217
        %s219 = sadd.s32 %s161, 1
        %s220 = sld [smem:[#allocation4 + %s219]]
        %s221 = smul.u32 %s219, 4
        %s222 = sld [smem:[#allocation3 + %s221]]
        %p223 = scmp.gt.s32.totalorder %s222, 0
        %s224 = scalar_select %p223, %s222, 0
        %p225 = scmp.lt.s32.totalorder %s224, 255
        %s226 = scalar_select %p225, %s224, 255
        %s227 = scalar_lea.vmem %s140, %s226 [#allocation5]
        %v228 = vld [vmem:[%s227] sm:$0x1]
        %p229 = scmp.gt.s32.totalorder %s220, 0
        %s230 = scalar_select %p229, 1, 0
        %s231 = scvt.s32.f32 %s230
        %v232 = vstv %s231
        %v233 = vmul.f32 %v228, %v232
        %v234 = vadd.f32 %v233, 0.0
        %s235 = sadd.s32 %s221, 1
        %s236 = sld [smem:[#allocation3 + %s235]]
        %p237 = scmp.gt.s32.totalorder %s236, 0
        %s238 = scalar_select %p237, %s236, 0
        %p239 = scmp.lt.s32.totalorder %s238, 255
        %s240 = scalar_select %p239, %s238, 255
        %s241 = scalar_lea.vmem %s140, %s240 [#allocation5]
        %v242 = vld [vmem:[%s241] sm:$0x1]
        %p243 = scmp.gt.s32.totalorder %s220, 1
        %s244 = scalar_select %p243, 1, 0
        %s245 = scvt.s32.f32 %s244
        %v246 = vstv %s245
        %v247 = vmul.f32 %v242, %v246
        %v248 = vadd.f32 %v234, %v247
        %s249 = sadd.s32 %s221, 2
        %s250 = sld [smem:[#allocation3 + %s249]]
        %p251 = scmp.gt.s32.totalorder %s250, 0
        %s252 = scalar_select %p251, %s250, 0
        %p253 = scmp.lt.s32.totalorder %s252, 255
        %s254 = scalar_select %p253, %s252, 255
        %s255 = scalar_lea.vmem %s140, %s254 [#allocation5]
        %v256 = vld [vmem:[%s255] sm:$0x1]
        %p257 = scmp.gt.s32.totalorder %s220, 2
        %s258 = scalar_select %p257, 1, 0
        %s259 = scvt.s32.f32 %s258
        %v260 = vstv %s259
        %v261 = vmul.f32 %v256, %v260
        %v262 = vadd.f32 %v248, %v261
        %s263 = sadd.s32 %s221, 3
        %s264 = sld [smem:[#allocation3 + %s263]]
        %p265 = scmp.gt.s32.totalorder %s264, 0
        %s266 = scalar_select %p265, %s264, 0
        %p267 = scmp.lt.s32.totalorder %s266, 255
        %s268 = scalar_select %p267, %s266, 255
        %s269 = scalar_lea.vmem %s140, %s268 [#allocation5]
        %v270 = vld [vmem:[%s269] sm:$0x1]
        %p271 = scmp.gt.s32.totalorder %s220, 3
        %s272 = scalar_select %p271, 1, 0
        %s273 = scvt.s32.f32 %s272
        %v274 = vstv %s273
        %v275 = vmul.f32 %v270, %v274
        %v276 = vadd.f32 %v262, %v275
        %s277 = sadd.s32 %s161, 2
        %s278 = sld [smem:[#allocation4 + %s277]]
        %s279 = smul.u32 %s277, 4
        %s280 = sld [smem:[#allocation3 + %s279]]
        %p281 = scmp.gt.s32.totalorder %s280, 0
        %s282 = scalar_select %p281, %s280, 0
        %p283 = scmp.lt.s32.totalorder %s282, 255
        %s284 = scalar_select %p283, %s282, 255
        %s285 = scalar_lea.vmem %s140, %s284 [#allocation5]
        %v286 = vld [vmem:[%s285] sm:$0x1]
        %p287 = scmp.gt.s32.totalorder %s278, 0
        %s288 = scalar_select %p287, 1, 0
        %s289 = scvt.s32.f32 %s288
        %v290 = vstv %s289
        %v291 = vmul.f32 %v286, %v290
        %v292 = vadd.f32 %v291, 0.0
        %s293 = sadd.s32 %s279, 1
        %s294 = sld [smem:[#allocation3 + %s293]]
        %p295 = scmp.gt.s32.totalorder %s294, 0
        %s296 = scalar_select %p295, %s294, 0
        %p297 = scmp.lt.s32.totalorder %s296, 255
        %s298 = scalar_select %p297, %s296, 255
        %s299 = scalar_lea.vmem %s140, %s298 [#allocation5]
        %v300 = vld [vmem:[%s299] sm:$0x1]
        %p301 = scmp.gt.s32.totalorder %s278, 1
        %s302 = scalar_select %p301, 1, 0
        %s303 = scvt.s32.f32 %s302
        %v304 = vstv %s303
        %v305 = vmul.f32 %v300, %v304
        %v306 = vadd.f32 %v292, %v305
        %s307 = sadd.s32 %s279, 2
        %s308 = sld [smem:[#allocation3 + %s307]]
        %p309 = scmp.gt.s32.totalorder %s308, 0
        %s310 = scalar_select %p309, %s308, 0
        %p311 = scmp.lt.s32.totalorder %s310, 255
        %s312 = scalar_select %p311, %s310, 255
        %s313 = scalar_lea.vmem %s140, %s312 [#allocation5]
        %v314 = vld [vmem:[%s313] sm:$0x1]
        %p315 = scmp.gt.s32.totalorder %s278, 2
        %s316 = scalar_select %p315, 1, 0
        %s317 = scvt.s32.f32 %s316
        %v318 = vstv %s317
        %v319 = vmul.f32 %v314, %v318
        %v320 = vadd.f32 %v306, %v319
        %s321 = sadd.s32 %s279, 3
        %s322 = sld [smem:[#allocation3 + %s321]]
        %p323 = scmp.gt.s32.totalorder %s322, 0
        %s324 = scalar_select %p323, %s322, 0
        %p325 = scmp.lt.s32.totalorder %s324, 255
        %s326 = scalar_select %p325, %s324, 255
        %s327 = scalar_lea.vmem %s140, %s326 [#allocation5]
        %v328 = vld [vmem:[%s327] sm:$0x1]
        %p329 = scmp.gt.s32.totalorder %s278, 3
        %s330 = scalar_select %p329, 1, 0
        %s331 = scvt.s32.f32 %s330
        %v332 = vstv %s331
        %v333 = vmul.f32 %v328, %v332
        %v334 = vadd.f32 %v320, %v333
        %s335 = sadd.s32 %s161, 3
        %s336 = sld [smem:[#allocation4 + %s335]]
        %s337 = smul.u32 %s335, 4
        %s338 = sld [smem:[#allocation3 + %s337]]
        %p339 = scmp.gt.s32.totalorder %s338, 0
        %s340 = scalar_select %p339, %s338, 0
        %p341 = scmp.lt.s32.totalorder %s340, 255
        %s342 = scalar_select %p341, %s340, 255
        %s343 = scalar_lea.vmem %s140, %s342 [#allocation5]
        %v344 = vld [vmem:[%s343] sm:$0x1]
        %p345 = scmp.gt.s32.totalorder %s336, 0
        %s346 = scalar_select %p345, 1, 0
        %s347 = scvt.s32.f32 %s346
        %v348 = vstv %s347
        %v349 = vmul.f32 %v344, %v348
        %v350 = vadd.f32 %v349, 0.0
        %s351 = sadd.s32 %s337, 1
        %s352 = sld [smem:[#allocation3 + %s351]]
        %p353 = scmp.gt.s32.totalorder %s352, 0
        %s354 = scalar_select %p353, %s352, 0
        %p355 = scmp.lt.s32.totalorder %s354, 255
        %s356 = scalar_select %p355, %s354, 255
        %s357 = scalar_lea.vmem %s140, %s356 [#allocation5]
        %v358 = vld [vmem:[%s357] sm:$0x1]
        %p359 = scmp.gt.s32.totalorder %s336, 1
        %s360 = scalar_select %p359, 1, 0
        %s361 = scvt.s32.f32 %s360
        %v362 = vstv %s361
        %v363 = vmul.f32 %v358, %v362
        %v364 = vadd.f32 %v350, %v363
        %s365 = sadd.s32 %s337, 2
        %s366 = sld [smem:[#allocation3 + %s365]]
        %p367 = scmp.gt.s32.totalorder %s366, 0
        %s368 = scalar_select %p367, %s366, 0
        %p369 = scmp.lt.s32.totalorder %s368, 255
        %s370 = scalar_select %p369, %s368, 255
        %s371 = scalar_lea.vmem %s140, %s370 [#allocation5]
        %v372 = vld [vmem:[%s371] sm:$0x1]
        %p373 = scmp.gt.s32.totalorder %s336, 2
        %s374 = scalar_select %p373, 1, 0
        %s375 = scvt.s32.f32 %s374
        %v376 = vstv %s375
        %v377 = vmul.f32 %v372, %v376
        %v378 = vadd.f32 %v364, %v377
        %s379 = sadd.s32 %s337, 3
        %s380 = sld [smem:[#allocation3 + %s379]]
        %p381 = scmp.gt.s32.totalorder %s380, 0
        %s382 = scalar_select %p381, %s380, 0
        %p383 = scmp.lt.s32.totalorder %s382, 255
        %s384 = scalar_select %p383, %s382, 255
        %s385 = scalar_lea.vmem %s140, %s384 [#allocation5]
        %v386 = vld [vmem:[%s385] sm:$0x1]
        %p387 = scmp.gt.s32.totalorder %s336, 3
        %s388 = scalar_select %p387, 1, 0
        %s389 = scvt.s32.f32 %s388
        %v390 = vstv %s389
        %v391 = vmul.f32 %v386, %v390
        %v392 = vadd.f32 %v378, %v391
        %s393 = sadd.s32 %s161, 4
        %s394 = sld [smem:[#allocation4 + %s393]]
        %s395 = smul.u32 %s393, 4
        %s396 = sld [smem:[#allocation3 + %s395]]
        %p397 = scmp.gt.s32.totalorder %s396, 0
        %s398 = scalar_select %p397, %s396, 0
        %p399 = scmp.lt.s32.totalorder %s398, 255
        %s400 = scalar_select %p399, %s398, 255
        %s401 = scalar_lea.vmem %s140, %s400 [#allocation5]
        %v402 = vld [vmem:[%s401] sm:$0x1]
        %p403 = scmp.gt.s32.totalorder %s394, 0
        %s404 = scalar_select %p403, 1, 0
        %s405 = scvt.s32.f32 %s404
        %v406 = vstv %s405
        %v407 = vmul.f32 %v402, %v406
        %v408 = vadd.f32 %v407, 0.0
        %s409 = sadd.s32 %s395, 1
        %s410 = sld [smem:[#allocation3 + %s409]]
        %p411 = scmp.gt.s32.totalorder %s410, 0
        %s412 = scalar_select %p411, %s410, 0
        %p413 = scmp.lt.s32.totalorder %s412, 255
        %s414 = scalar_select %p413, %s412, 255
        %s415 = scalar_lea.vmem %s140, %s414 [#allocation5]
        %v416 = vld [vmem:[%s415] sm:$0x1]
        %p417 = scmp.gt.s32.totalorder %s394, 1
        %s418 = scalar_select %p417, 1, 0
        %s419 = scvt.s32.f32 %s418
        %v420 = vstv %s419
        %v421 = vmul.f32 %v416, %v420
        %v422 = vadd.f32 %v408, %v421
        %s423 = sadd.s32 %s395, 2
        %s424 = sld [smem:[#allocation3 + %s423]]
        %p425 = scmp.gt.s32.totalorder %s424, 0
        %s426 = scalar_select %p425, %s424, 0
        %p427 = scmp.lt.s32.totalorder %s426, 255
        %s428 = scalar_select %p427, %s426, 255
        %s429 = scalar_lea.vmem %s140, %s428 [#allocation5]
        %v430 = vld [vmem:[%s429] sm:$0x1]
        %p431 = scmp.gt.s32.totalorder %s394, 2
        %s432 = scalar_select %p431, 1, 0
        %s433 = scvt.s32.f32 %s432
        %v434 = vstv %s433
        %v435 = vmul.f32 %v430, %v434
        %v436 = vadd.f32 %v422, %v435
        %s437 = sadd.s32 %s395, 3
        %s438 = sld [smem:[#allocation3 + %s437]]
        %p439 = scmp.gt.s32.totalorder %s438, 0
        %s440 = scalar_select %p439, %s438, 0
        %p441 = scmp.lt.s32.totalorder %s440, 255
        %s442 = scalar_select %p441, %s440, 255
        %s443 = scalar_lea.vmem %s140, %s442 [#allocation5]
        %v444 = vld [vmem:[%s443] sm:$0x1]
        %p445 = scmp.gt.s32.totalorder %s394, 3
        %s446 = scalar_select %p445, 1, 0
        %s447 = scvt.s32.f32 %s446
        %v448 = vstv %s447
        %v449 = vmul.f32 %v444, %v448
        %v450 = vadd.f32 %v436, %v449
        %s451 = sadd.s32 %s161, 5
        %s452 = sld [smem:[#allocation4 + %s451]]
        %s453 = smul.u32 %s451, 4
        %s454 = sld [smem:[#allocation3 + %s453]]
        %p455 = scmp.gt.s32.totalorder %s454, 0
        %s456 = scalar_select %p455, %s454, 0
        %p457 = scmp.lt.s32.totalorder %s456, 255
        %s458 = scalar_select %p457, %s456, 255
        %s459 = scalar_lea.vmem %s140, %s458 [#allocation5]
        %v460 = vld [vmem:[%s459] sm:$0x1]
        %p461 = scmp.gt.s32.totalorder %s452, 0
        %s462 = scalar_select %p461, 1, 0
        %s463 = scvt.s32.f32 %s462
        %v464 = vstv %s463
        %v465 = vmul.f32 %v460, %v464
        %v466 = vadd.f32 %v465, 0.0
        %s467 = sadd.s32 %s453, 1
        %s468 = sld [smem:[#allocation3 + %s467]]
        %p469 = scmp.gt.s32.totalorder %s468, 0
        %s470 = scalar_select %p469, %s468, 0
        %p471 = scmp.lt.s32.totalorder %s470, 255
        %s472 = scalar_select %p471, %s470, 255
        %s473 = scalar_lea.vmem %s140, %s472 [#allocation5]
        %v474 = vld [vmem:[%s473] sm:$0x1]
        %p475 = scmp.gt.s32.totalorder %s452, 1
        %s476 = scalar_select %p475, 1, 0
        %s477 = scvt.s32.f32 %s476
        %v478 = vstv %s477
        %v479 = vmul.f32 %v474, %v478
        %v480 = vadd.f32 %v466, %v479
        %s481 = sadd.s32 %s453, 2
        %s482 = sld [smem:[#allocation3 + %s481]]
        %p483 = scmp.gt.s32.totalorder %s482, 0
        %s484 = scalar_select %p483, %s482, 0
        %p485 = scmp.lt.s32.totalorder %s484, 255
        %s486 = scalar_select %p485, %s484, 255
        %s487 = scalar_lea.vmem %s140, %s486 [#allocation5]
        %v488 = vld [vmem:[%s487] sm:$0x1]
        %p489 = scmp.gt.s32.totalorder %s452, 2
        %s490 = scalar_select %p489, 1, 0
        %s491 = scvt.s32.f32 %s490
        %v492 = vstv %s491
        %v493 = vmul.f32 %v488, %v492
        %v494 = vadd.f32 %v480, %v493
        %s495 = sadd.s32 %s453, 3
        %s496 = sld [smem:[#allocation3 + %s495]]
        %p497 = scmp.gt.s32.totalorder %s496, 0
        %s498 = scalar_select %p497, %s496, 0
        %p499 = scmp.lt.s32.totalorder %s498, 255
        %s500 = scalar_select %p499, %s498, 255
        %s501 = scalar_lea.vmem %s140, %s500 [#allocation5]
        %v502 = vld [vmem:[%s501] sm:$0x1]
        %p503 = scmp.gt.s32.totalorder %s452, 3
        %s504 = scalar_select %p503, 1, 0
        %s505 = scvt.s32.f32 %s504
        %v506 = vstv %s505
        %v507 = vmul.f32 %v502, %v506
        %v508 = vadd.f32 %v494, %v507
        %s509 = sadd.s32 %s161, 6
        %s510 = sld [smem:[#allocation4 + %s509]]
        %s511 = smul.u32 %s509, 4
        %s512 = sld [smem:[#allocation3 + %s511]]
        %p513 = scmp.gt.s32.totalorder %s512, 0
        %s514 = scalar_select %p513, %s512, 0
        %p515 = scmp.lt.s32.totalorder %s514, 255
        %s516 = scalar_select %p515, %s514, 255
        %s517 = scalar_lea.vmem %s140, %s516 [#allocation5]
        %v518 = vld [vmem:[%s517] sm:$0x1]
        %p519 = scmp.gt.s32.totalorder %s510, 0
        %s520 = scalar_select %p519, 1, 0
        %s521 = scvt.s32.f32 %s520
        %v522 = vstv %s521
        %v523 = vmul.f32 %v518, %v522
        %v524 = vadd.f32 %v523, 0.0
        %s525 = sadd.s32 %s511, 1
        %s526 = sld [smem:[#allocation3 + %s525]]
        %p527 = scmp.gt.s32.totalorder %s526, 0
        %s528 = scalar_select %p527, %s526, 0
        %p529 = scmp.lt.s32.totalorder %s528, 255
        %s530 = scalar_select %p529, %s528, 255
        %s531 = scalar_lea.vmem %s140, %s530 [#allocation5]
        %v532 = vld [vmem:[%s531] sm:$0x1]
        %p533 = scmp.gt.s32.totalorder %s510, 1
        %s534 = scalar_select %p533, 1, 0
        %s535 = scvt.s32.f32 %s534
        %v536 = vstv %s535
        %v537 = vmul.f32 %v532, %v536
        %v538 = vadd.f32 %v524, %v537
        %s539 = sadd.s32 %s511, 2
        %s540 = sld [smem:[#allocation3 + %s539]]
        %p541 = scmp.gt.s32.totalorder %s540, 0
        %s542 = scalar_select %p541, %s540, 0
        %p543 = scmp.lt.s32.totalorder %s542, 255
        %s544 = scalar_select %p543, %s542, 255
        %s545 = scalar_lea.vmem %s140, %s544 [#allocation5]
        %v546 = vld [vmem:[%s545] sm:$0x1]
        %p547 = scmp.gt.s32.totalorder %s510, 2
        %s548 = scalar_select %p547, 1, 0
        %s549 = scvt.s32.f32 %s548
        %v550 = vstv %s549
        %v551 = vmul.f32 %v546, %v550
        %v552 = vadd.f32 %v538, %v551
        %s553 = sadd.s32 %s511, 3
        %s554 = sld [smem:[#allocation3 + %s553]]
        %p555 = scmp.gt.s32.totalorder %s554, 0
        %s556 = scalar_select %p555, %s554, 0
        %p557 = scmp.lt.s32.totalorder %s556, 255
        %s558 = scalar_select %p557, %s556, 255
        %s559 = scalar_lea.vmem %s140, %s558 [#allocation5]
        %v560 = vld [vmem:[%s559] sm:$0x1]
        %p561 = scmp.gt.s32.totalorder %s510, 3
        %s562 = scalar_select %p561, 1, 0
        %s563 = scvt.s32.f32 %s562
        %v564 = vstv %s563
        %v565 = vmul.f32 %v560, %v564
        %v566 = vadd.f32 %v552, %v565
        %s567 = sadd.s32 %s161, 7
        %s568 = sld [smem:[#allocation4 + %s567]]
        %s569 = smul.u32 %s567, 4
        %s570 = sld [smem:[#allocation3 + %s569]]
        %p571 = scmp.gt.s32.totalorder %s570, 0
        %s572 = scalar_select %p571, %s570, 0
        %p573 = scmp.lt.s32.totalorder %s572, 255
        %s574 = scalar_select %p573, %s572, 255
        %s575 = scalar_lea.vmem %s140, %s574 [#allocation5]
        %v576 = vld [vmem:[%s575] sm:$0x1]
        %p577 = scmp.gt.s32.totalorder %s568, 0
        %s578 = scalar_select %p577, 1, 0
        %s579 = scvt.s32.f32 %s578
        %v580 = vstv %s579
        %v581 = vmul.f32 %v576, %v580
        %v582 = vadd.f32 %v581, 0.0
        %s583 = sadd.s32 %s569, 1
        %s584 = sld [smem:[#allocation3 + %s583]]
        %p585 = scmp.gt.s32.totalorder %s584, 0
        %s586 = scalar_select %p585, %s584, 0
        %p587 = scmp.lt.s32.totalorder %s586, 255
        %s588 = scalar_select %p587, %s586, 255
        %s589 = scalar_lea.vmem %s140, %s588 [#allocation5]
        %v590 = vld [vmem:[%s589] sm:$0x1]
        %p591 = scmp.gt.s32.totalorder %s568, 1
        %s592 = scalar_select %p591, 1, 0
        %s593 = scvt.s32.f32 %s592
        %v594 = vstv %s593
        %v595 = vmul.f32 %v590, %v594
        %v596 = vadd.f32 %v582, %v595
        %s597 = sadd.s32 %s569, 2
        %s598 = sld [smem:[#allocation3 + %s597]]
        %p599 = scmp.gt.s32.totalorder %s598, 0
        %s600 = scalar_select %p599, %s598, 0
        %p601 = scmp.lt.s32.totalorder %s600, 255
        %s602 = scalar_select %p601, %s600, 255
        %s603 = scalar_lea.vmem %s140, %s602 [#allocation5]
        %v604 = vld [vmem:[%s603] sm:$0x1]
        %p605 = scmp.gt.s32.totalorder %s568, 2
        %s606 = scalar_select %p605, 1, 0
        %s607 = scvt.s32.f32 %s606
        %v608 = vstv %s607
        %v609 = vmul.f32 %v604, %v608
        %v610 = vadd.f32 %v596, %v609
        %s611 = sadd.s32 %s569, 3
        %s612 = sld [smem:[#allocation3 + %s611]]
        %p613 = scmp.gt.s32.totalorder %s612, 0
        %s614 = scalar_select %p613, %s612, 0
        %p615 = scmp.lt.s32.totalorder %s614, 255
        %s616 = scalar_select %p615, %s614, 255
        %s617 = scalar_lea.vmem %s140, %s616 [#allocation5]
        %v618 = vld [vmem:[%s617] sm:$0x1]
        %p619 = scmp.gt.s32.totalorder %s568, 3
        %s620 = scalar_select %p619, 1, 0
        %s621 = scvt.s32.f32 %s620
        %v622 = vstv %s621
        %v623 = vmul.f32 %v618, %v622
        %v624 = vadd.f32 %v610, %v623
        %v626 = vrot.slane %v276, 7
        %v629 = vrot.slane %v334, 6
        %v632 = vrot.slane %v392, 5
        %v635 = vrot.slane %v450, 4
        %v638 = vrot.slane %v508, 3
        %v641 = vrot.slane %v566, 2
        %v644 = vrot.slane %v624, 1
        %vm646 = vcmask 1040384
        %v647 = vsel %vm646, %v218, %v626
        %vm648 = vcmask 1041408
        %v649 = vsel %vm648, %v647, %v629
        %vm650 = vcmask 1042432
        %v651 = vsel %vm650, %v649, %v632
        %vm652 = vcmask 1043456
        %v653 = vsel %vm652, %v651, %v635
        %vm654 = vcmask 1044480
        %v655 = vsel %vm654, %v653, %v638
        %vm656 = vcmask 1045504
        %v657 = vsel %vm656, %v655, %v641
        %vm658 = vcmask 1046528
        %v659 = vsel %vm658, %v657, %v644
        %660 = vst [vmem:[%s158] sm:$0xff] %v659
        %s661 = sand.u32 %s76, 1
        %s662 = scalar_lea.sflag [#allocation7], %s661
        %s663 = sand.u32 %s76, 1
        %s664 = smul.addr %s663, 8
        %s665 = scalar_lea.vmem [#allocation8], %s664
        // Predicated region
        $region29: #{tpu_custom_call.1} parent=23 // pred_check
          %p666 = pneg %p86
        $region30: #{tpu_custom_call.1} parent=23 // pred_check_branch
          %668 = sbr.rel (%p666) target = $region32
        $region31: #{tpu_custom_call.1} parent=23 // pred_region
          %s670 = ssub.s32 128, 128
          %671 = vsyncadd %s662, %s670
          %s672 = smul.addr %s33, 3
          %s673 = sadd.s32 %s32, %s672
          %s674 = smul.addr %s673, 128
          %s675 = scalar_lea.hbm %s3, %s674
          %s677 = sshll.u32 %s665, 4
          %s678 = int_to_ptr.vmem [resolvable:$true] %s677
          %680 = dma.vmem_to_hbm [thread:$0]  %s678, 128, %s675, %s662
        $region32: #{tpu_custom_call.1} parent=23 // pred_fallthru
          _
      $region24: #{tpu_custom_call.1} parent=5 // pred_fallthru
        _
      %p681 = scmp.le.s32.totalorder 2, %s23
      // Predicated region
      $region33: #{tpu_custom_call.1} parent=5 // pred_check
        %p682 = pneg %p681
      $region34: #{tpu_custom_call.1} parent=5 // pred_check_branch
        %684 = sbr.rel (%p682) target = $region36
      $region35: #{tpu_custom_call.1} parent=5 // pred_region
        %s685 = ssub.s32 %s23, 2
        // Predicated region
        $region37: #{tpu_custom_call.1} parent=35 // pred_check
          %p686 = pneg %p92
        $region38: #{tpu_custom_call.1} parent=35 // pred_check_branch
          %688 = sbr.rel (%p686) target = $region40
        $region39: #{tpu_custom_call.1} parent=35 // pred_region
          %s689 = sand.u32 %s77, 1
          %s690 = scalar_lea.sflag [#allocation7], %s689
          %s691 = sand.u32 %s77, 1
          %s692 = smul.addr %s691, 8
          %s693 = scalar_lea.vmem [#allocation8], %s692
          %694 = dma.done %s690, 128
        $region40: #{tpu_custom_call.1} parent=35 // pred_fallthru
          _
      $region36: #{tpu_custom_call.1} parent=5 // pred_fallthru
        _
    $region6: #{tpu_custom_call.1} parent=1 // loop_footer
      %s27 = sadd.s32 1, %s23
    $region7: #{tpu_custom_call.1} parent=1 // loop_footer_branch
      %22 = sbr.rel target = $region3
    $region8: #{tpu_custom_call.1} parent=1 // loop_exit
      _
    %695 = vsyncpa [#allocation6], 1
    %s696 = scalar_lea.sflag [#allocation6], 1
    %697 = vsyncpa %s696, 1
    %698 = vsyncpa [#allocation7], 1
    %s699 = scalar_lea.sflag [#allocation7], 1
    %700 = vsyncpa %s699, 1

</llo_original>
